<compile_context>
chip_gen: v7x
topology: tpu7x:2x2x1
jax: 0.10.0
libtpu: 0.0.40
codegen_flags: <defaults>
</compile_context>

<pallas_src>
import numpy as np
import jax
import jax.numpy as jnp
from jax.experimental import pallas as pl
from jax.experimental.pallas import tpu as pltpu

_MIB = 1024 * 1024


def _physical_vmem_bytes():
    """Physical VMEM of the local chip; conservative fallback (v7x = 64 MiB)."""
    try:
        return int(pltpu.get_tpu_info().vmem_capacity_bytes)
    except Exception:
        return 64 * _MIB


def _sublane_multiple(itemsize):
    # f32 -> 8, bf16/f16 -> 16, int8/fp8 -> 32 (packed-sublane tiling).
    return max(8, 32 // int(itemsize))


def _choose_batch_tile(B, F, D, itemsize, split_store):
    """Largest batch tile whose double-buffered pipeline working set fits the
    per-generation VMEM tile budget.  Sized purely by bytes (no artificial row
    cap) so per-grid-step overhead is amortized and each DMA is multi-MiB."""
    physical = _physical_vmem_bytes()
    # Tile budget: ~1/3 of physical VMEM, capped at 24 MiB (=> ~21 MiB on v7x's
    # 64 MiB part, 24 MiB on v5e/v6e).  Headroom is left for Mosaic internals,
    # semaphores and the resident log_std block; the scoped limit itself is
    # raised via vmem_limit_bytes in the pallas_call below.
    tile_budget = min(physical // 3, 24 * _MIB)

    # Per-row working set:
    #   2x input tile + 2x output tile (double-buffered pipeline)
    #   + one output-sized concat intermediate (concat path only)
    #   + the broadcast log_std vregs.
    per_row_elems = 2 * F + 2 * (F + D) + D
    if not split_store:
        per_row_elems += (F + D)
    bytes_per_row = per_row_elems * itemsize

    sub = _sublane_multiple(itemsize)
    tb = tile_budget // max(bytes_per_row, 1)
    tb = max(sub, (tb // sub) * sub)
    if B <= tb:
        return B  # single block; full-extent block dims are always legal
    return tb


def _batch_axis_semantics(num_blocks):
    """Plain 'parallel' everywhere; pltpu.CORE_PARALLEL on v7x (2 TC/chip) so the
    batch grid axis is sharded across both TensorCores' DMA paths."""
    core_parallel = getattr(pltpu, "CORE_PARALLEL", None)
    try:
        kind = jax.devices()[0].device_kind.lower()
    except Exception:
        kind = ""
    is_v7 = ("v7" in kind) or ("tpu7" in kind)
    if is_v7 and (core_parallel is not None) and num_blocks >= 2:
        return (core_parallel,)
    return ("parallel",)


def _make_append_kernel(split_store):
    def kernel(x_ref, logstd_ref, o_ref):
        tb, F = x_ref.shape
        D = logstd_ref.shape[-1]
        x = x_ref[...].astype(o_ref.dtype)
        # Per-step broadcast of the resident (1, D) log_std row: cheap VPU work
        # hidden under the HBM-bound DMA.  (A persistent (tb, D) scratch filled
        # only at program_id==0 would break under a core-parallel batch axis.)
        ls = jnp.broadcast_to(logstd_ref[...], (tb, D)).astype(o_ref.dtype)
        if split_store:
            # F % 128 == 0: two lane-aligned sub-slice stores, no concat
            # intermediate (saves an output-sized VMEM buffer -> larger tb).
            o_ref[:, :F] = x
            o_ref[:, F:] = ls
        else:
            # Lane-unaligned F: assemble in registers, one full-width store.
            o_ref[...] = jnp.concatenate([x, ls], axis=-1)
    return kernel


def append_log_std(x, log_std, *, tb=None):
    """x: [B, F], log_std: [D] (or [1, D]) -> [B, F + D] in x.dtype."""
    if x.ndim != 2:
        raise ValueError(f"expected 2-D input [batch, features], got {x.shape}")
    B, F = x.shape
    log_std_2d = jnp.asarray(log_std).reshape(1, -1).astype(x.dtype)
    D = log_std_2d.shape[-1]
    itemsize = jnp.dtype(x.dtype).itemsize

    split_store = (F % 128 == 0)
    if tb is None:
        tb = _choose_batch_tile(B, F, D, itemsize, split_store)
    num_blocks = pl.cdiv(B, tb)

    vmem_limit = int(min((_physical_vmem_bytes() * 3) // 4, 112 * _MIB))

    return pl.pallas_call(
        _make_append_kernel(split_store),
        out_shape=jax.ShapeDtypeStruct((B, F + D), x.dtype),
        grid_spec=pltpu.PrefetchScalarGridSpec(
            num_scalar_prefetch=0,
            grid=(num_blocks,),
            in_specs=[
                pl.BlockSpec((tb, F), lambda i: (i, 0)),   # batch-tiled input
                pl.BlockSpec((1, D), lambda i: (0, 0)),    # log_std stays resident
            ],
            out_specs=pl.BlockSpec((tb, F + D), lambda i: (i, 0)),
        ),
        compiler_params=pltpu.CompilerParams(
            dimension_semantics=_batch_axis_semantics(num_blocks),
            vmem_limit_bytes=vmem_limit,
        ),
    )(x, log_std_2d)


class AppendLogStd:
    """JAX/Pallas equivalent of the PyTorch AppendLogStd module (forward only)."""

    def __init__(self, init_log_std, dim, fixed_grad=True):
        # Same init as torch: [init_log_std] * dim, float32 parameter.
        self.log_std = jnp.full((dim,), init_log_std, dtype=jnp.float32)
        self.fixed_grad = fixed_grad  # no-op here (forward-only kernel)

    def set_value(self, val):
        self.log_std = jnp.full(self.log_std.shape, np.log(val), dtype=jnp.float32)

    def __call__(self, x, *, tb=None):
        return append_log_std(x, self.log_std, tb=tb)


if __name__ == "__main__":
    def ref_forward(x, log_std):
        B = x.shape[0]
        D = log_std.shape[0]
        return jnp.concatenate(
            [x, jnp.broadcast_to(log_std[None, :].astype(x.dtype), (B, D))], axis=-1)

    # --- case 1: small module-consistent shape (hidden=32), single batch block ---
    B, F, dim = 8, 32, 32
    x = jax.random.normal(jax.random.PRNGKey(0), (B, F), dtype=jnp.float32)
    mod = AppendLogStd(-0.5, dim, fixed_grad=True)
    out = jax.block_until_ready(mod(x))
    np.testing.assert_allclose(np.asarray(out), np.asarray(ref_forward(x, mod.log_std)),
                               rtol=0, atol=0)
    assert out.shape == (B, F + dim) and out.dtype == x.dtype

    # --- case 2: batch-tiled concat path, ragged last block (B=20, tb=8) ---
    B2 = 20
    x2 = jax.random.normal(jax.random.PRNGKey(1), (B2, F), dtype=jnp.float32)
    out2 = jax.block_until_ready(mod(x2, tb=8))
    np.testing.assert_allclose(np.asarray(out2), np.asarray(ref_forward(x2, mod.log_std)),
                               rtol=0, atol=0)
    assert out2.shape == (B2, F + dim)

    # --- case 3: lane-aligned split-store path (F % 128 == 0), bf16, tiled ---
    B3, F3, D3 = 64, 256, 128
    x3 = jax.random.normal(jax.random.PRNGKey(2), (B3, F3), dtype=jnp.bfloat16)
    mod3 = AppendLogStd(-1.0, D3)
    out3 = jax.block_until_ready(mod3(x3, tb=16))
    np.testing.assert_allclose(np.asarray(out3).astype(np.float32),
                               np.asarray(ref_forward(x3, mod3.log_std)).astype(np.float32),
                               rtol=0, atol=0)
    assert out3.shape == (B3, F3 + D3) and out3.dtype == x3.dtype

    # --- set_value semantics (matches torch.full(..., np.log(val))) ---
    mod.set_value(0.25)
    out4 = jax.block_until_ready(mod(x))
    np.testing.assert_allclose(np.asarray(out4[:, F:]),
                               np.full((B, dim), np.log(0.25), dtype=np.float32),
                               rtol=0, atol=1e-6)

    print("KERNEL_OK")
</pallas_src>

<mosaic_0001>
module attributes {stable_mosaic.version = 11 : i64} {
  func.func @kernel(%arg0: i32, %arg1: memref<8x32xf32, #tpu.memory_space<vmem>>, %arg2: memref<1x32xf32, #tpu.memory_space<vmem>>, %arg3: memref<8x64xf32, #tpu.memory_space<vmem>>) attributes {dimension_semantics = [#tpu.dimension_semantics<parallel>], iteration_bounds = array<i64: 1>, scalar_prefetch = 0 : i64, scratch_operands = 0 : i64, tpu.core_type = #tpu.core_type<tc>, window_params = [{transform_indices = @transform_0, window_bounds = array<i64: 8, 32>}, {pipeline_mode = #tpu.pipeline_mode<synchronous>, transform_indices = @transform_1, window_bounds = array<i64: 1, 32>}, {transform_indices = @transform_2, window_bounds = array<i64: 8, 64>}]} {
    %c0 = arith.constant 0 : index
    %c0_0 = arith.constant 0 : index
    %0 = vector.load %arg1[%c0, %c0_0] : memref<8x32xf32, #tpu.memory_space<vmem>>, vector<8x32xf32>
    %c0_1 = arith.constant 0 : index
    %c0_2 = arith.constant 0 : index
    %1 = vector.load %arg2[%c0_1, %c0_2] : memref<1x32xf32, #tpu.memory_space<vmem>>, vector<1x32xf32>
    %2 = vector.shape_cast %1 : vector<1x32xf32> to vector<1x32xf32>
    %3 = vector.broadcast %2 : vector<1x32xf32> to vector<8x32xf32>
    %4 = tpu.concatenate %0, %3 in 1 : vector<8x32xf32>, vector<8x32xf32> -> vector<8x64xf32>
    %c0_3 = arith.constant 0 : index
    %c0_4 = arith.constant 0 : index
    %5 = vector.load %arg3[%c0_3, %c0_4] : memref<8x64xf32, #tpu.memory_space<vmem>>, vector<8x64xf32>
    tpu.vector_store %arg3[%c0_3, %c0_4], %4 {strides = array<i32>} : memref<8x64xf32, #tpu.memory_space<vmem>>, vector<8x64xf32>,
    return
  }
  func.func @transform_0(%arg0: i32) -> (i32, i32) {
    %c0_i32 = arith.constant 0 : i32
    %c0_i32_0 = arith.constant 0 : i32
    return %arg0, %c0_i32 : i32, i32
  }
  func.func @transform_1(%arg0: i32) -> (i32, i32) {
    %c0_i32 = arith.constant 0 : i32
    %c0_i32_0 = arith.constant 0 : i32
    %c0_i32_1 = arith.constant 0 : i32
    return %c0_i32, %c0_i32_0 : i32, i32
  }
  func.func @transform_2(%arg0: i32) -> (i32, i32) {
    %c0_i32 = arith.constant 0 : i32
    %c0_i32_0 = arith.constant 0 : i32
    return %arg0, %c0_i32 : i32, i32
  }
}

</mosaic_0001>

<llo_original>
// kernel: tpu_custom_call.1
$region0: #{tpu_custom_call.1}
  #allocation0 [shape = 'u32[]', space=smem, size = 0x4, offset = 0x4, fixed_abs, tag = 'smem constant byte address 0x4 - core index']
  #allocation1 [shape = 'u32[144,128]{1,0:T(1,128)}', space=vmem, size = 0x12000, scoped, tag = 'internal scratch']
  %s0 = inlined_call_operand.hbm [shape: f32[8,32], index: 0, kind: input, shape index: {}]
  %s1 = inlined_call_operand.vmem [shape: f32[1,32], index: 1, kind: input, shape index: {}]
  %s2 = inlined_call_operand.hbm [shape: f32[8,64], index: 2, kind: output, shape index: {}]
  %s3 = sld [smem:[#allocation0]]
  $region22: #{tpu_custom_call.1} parent=0
    _
  %s5 = ssub.s32 1, %s3
  %s6 = scalar_select 0, %s5, %s3
  $region1: #{tpu_custom_call.1} parent=0
    #allocation2 [shape = 'u8[4096]{0}', space=vmem, size = 0x1000, scoped, tag = 'input window, operand 0, single buffered']
    #allocation3 [shape = 's32[1]{0}', space=sflag, size = 0x4, scoped, tag = 'scoped memory for tpu_custom_call.1']
    #allocation4 [shape = 's32[1]{0}', space=sflag, size = 0x4, scoped, tag = 'scoped memory for tpu_custom_call.1']
    #allocation5 [shape = 'u8[4096]{0}', space=vmem, size = 0x1000, scoped, tag = 'output window, operand 0, single buffered']
    %7 = vsyncpa [#allocation3], 0
    %8 = vsyncpa [#allocation4], 0
    // Predicated region
    $region2: #{tpu_custom_call.1} parent=1 // pred_check
      _
    $region3: #{tpu_custom_call.1} parent=1 // pred_check_branch
      %10 = sbr.rel (0) target = $region5
    $region4: #{tpu_custom_call.1} parent=1 // pred_region
      %s12 = ssub.s32 128, 128
      %13 = vsyncadd [#allocation3], %s12
      %s15 = sshll.u32 [#allocation2], 4
      %s16 = int_to_ptr.vmem [resolvable:$true] %s15
      %18 = dma.hbm_to_vmem [thread:$0]  %s0, 128, %s16, [#allocation3]
    $region5: #{tpu_custom_call.1} parent=1 // pred_fallthru
      _
    // Predicated region
    $region6: #{tpu_custom_call.1} parent=1 // pred_check
      _
    $region7: #{tpu_custom_call.1} parent=1 // pred_check_branch
      %20 = sbr.rel (0) target = $region9
    $region8: #{tpu_custom_call.1} parent=1 // pred_region
      _
    $region9: #{tpu_custom_call.1} parent=1 // pred_fallthru
      _
    // Predicated region
    $region10: #{tpu_custom_call.1} parent=1 // pred_check
      _
    $region11: #{tpu_custom_call.1} parent=1 // pred_check_branch
      %22 = sbr.rel (0) target = $region13
    $region12: #{tpu_custom_call.1} parent=1 // pred_region
      %23 = dma.done [#allocation3], 128
    $region13: #{tpu_custom_call.1} parent=1 // pred_fallthru
      _
    %v24 = vld [vmem:[#allocation2] sm:$0xff]
    %v25 = vld [vmem:[%s1] sm:$0x1]
    %v27 = vlaneseq
    %v28 = vshrl.u32 %v27, 7
    %v29 = vsub.s32 0, %v28
    %v30 = vrot.slane %v25, %v29
    %31 = vrot.lane.b32.xlu0 %v30, 32
    %v32 = vpop.permute.xlu0 %31
    %vm34 = vcmask 261120
    %v35 = vsel %vm34, %v24, %v32
    %vm36 = vcmask 523264
    %37 = vst.msk [vmem:[#allocation5] sm:$0xff] %vm36, %v35
    // Predicated region
    $region14: #{tpu_custom_call.1} parent=1 // pred_check
      _
    $region15: #{tpu_custom_call.1} parent=1 // pred_check_branch
      %39 = sbr.rel (0) target = $region17
    $region16: #{tpu_custom_call.1} parent=1 // pred_region
      %s41 = ssub.s32 128, 128
      %42 = vsyncadd [#allocation4], %s41
      %s44 = sshll.u32 [#allocation5], 4
      %s45 = int_to_ptr.vmem [resolvable:$true] %s44
      %47 = dma.vmem_to_hbm [thread:$0]  %s45, 128, %s2, [#allocation4]
    $region17: #{tpu_custom_call.1} parent=1 // pred_fallthru
      _
    // Predicated region
    $region18: #{tpu_custom_call.1} parent=1 // pred_check
      _
    $region19: #{tpu_custom_call.1} parent=1 // pred_check_branch
      %49 = sbr.rel (0) target = $region21
    $region20: #{tpu_custom_call.1} parent=1 // pred_region
      %50 = dma.done [#allocation4], 128
    $region21: #{tpu_custom_call.1} parent=1 // pred_fallthru
      _
    %51 = vsyncpa [#allocation3], 1
    %52 = vsyncpa [#allocation4], 1

</llo_original>
